<compile_context>
chip_gen: v7x
topology: tpu7x:2x2x1
jax: 0.10.0
libtpu: 0.0.40
codegen_flags: <defaults>
</compile_context>

<pallas_src>
import jax
import jax.numpy as jnp
from jax import lax
from jax.experimental import pallas as pl
from jax.experimental.pallas import tpu as pltpu


_LANE = 128
_MASK_NEG = -1e30   # finite "minus infinity": exp() underflows to 0 exactly in f32


def _head_kernel(x_ref, bias_ref, w_ref, out_ref):
    # x_ref:    [BB, T, C]    bf16 block of batch elements
    # bias_ref: [BB, 1, T]    f32 additive key mask (0 keep, -1e30 masked)
    # w_ref:    [C, 3*Hp]     bf16 fused QKV weight, each segment padded to Hp lanes,
    #                         softmax scale folded into the Q segment
    # out_ref:  [BB, T, Hp]   f32, lane-dense (Hp is a multiple of 128)
    BB, T, C = x_ref.shape
    Hp = out_ref.shape[-1]

    # Fused QKV projection: one MXU matmul of [BB*T, C] x [C, 3*Hp].
    # (leading-dim reshapes keep the minor dim, so they are layout-preserving)
    x2 = x_ref[...].reshape(BB * T, C)
    qkv = lax.dot_general(x2, w_ref[...], (((1,), (0,)), ((), ())),
                          preferred_element_type=jnp.float32)        # [BB*T, 3*Hp] f32

    # 128-lane-aligned segment slices; zero-padded tail columns are inert.
    q = qkv[:, 0:Hp].astype(jnp.bfloat16).reshape(BB, T, Hp)          # scale pre-folded
    k = qkv[:, Hp:2 * Hp].astype(jnp.bfloat16).reshape(BB, T, Hp)
    v = qkv[:, 2 * Hp:3 * Hp].astype(jnp.bfloat16).reshape(BB, T, Hp)

    # Scores: batched q @ k^T (no in-kernel transpose), f32 accumulation.
    wei = lax.dot_general(q, k, (((2,), (2,)), ((0,), (0,))),
                          preferred_element_type=jnp.float32)         # [BB, T, T]
    wei = wei + bias_ref[...]                                         # broadcast [BB,1,T]

    # Numerically stable softmax over the key dim (exact normalization).
    wei_max = jnp.max(wei, axis=-1, keepdims=True)
    e = jnp.exp(wei - wei_max)
    p = e / jnp.sum(e, axis=-1, keepdims=True)

    # dropout: identity (eval mode)

    out = lax.dot_general(p.astype(jnp.bfloat16), v, (((2,), (1,)), ((0,), (0,))),
                          preferred_element_type=jnp.float32)         # [BB, T, Hp]
    out_ref[...] = out.astype(out_ref.dtype)                          # dense 128-lane store


def _round_up(n, m):
    return ((n + m - 1) // m) * m


def _tensorcores_per_chip():
    """2 on v7x (dual TensorCore); 1 on v5e/v6e. Defaults to 1 if unknown."""
    try:
        kind = jax.devices()[0].device_kind.lower()
    except Exception:
        return 1
    return 2 if "v7" in kind else 1


def _vmem_block_bytes(block_b, T, C, Hp):
    """Rough VMEM footprint of one grid step (double-buffered I/O + temporaries)."""
    bf16, f32 = 2, 4
    io = 2 * (block_b * T * C * bf16          # x block
              + block_b * 1 * T * f32         # mask-bias block
              + C * 3 * Hp * bf16             # fused weight (grid-invariant)
              + block_b * T * Hp * f32)       # out block
    tmp = (block_b * T * 3 * Hp * f32         # qkv
           + 3 * block_b * T * Hp * bf16      # q/k/v copies
           + 3 * block_b * T * T * f32        # wei / e / p
           + block_b * T * Hp * f32)          # out
    return io + tmp


def _pick_block_b(B, T, C, Hp, *, vmem_budget_bytes=12 * 1024 * 1024):
    """Largest divisor of B fitting the VMEM budget; on dual-TC chips (v7x) keep the
    batch grid at >= 2 parallel steps so both TensorCores get work."""
    max_bb = B
    if _tensorcores_per_chip() >= 2 and B >= 2:
        max_bb = max(1, B // 2)
    best = 1
    for cand in range(1, max_bb + 1):
        if B % cand == 0 and _vmem_block_bytes(cand, T, C, Hp) <= vmem_budget_bytes:
            best = cand
    return best


def head_forward(x, attention_mask, wq, wk, wv, *, block_b=None):
    """x: [B, T, C] f32; attention_mask: [B, T]; wq/wk/wv: [H, C] -> out [B, T, H]."""
    B, T, C = x.shape
    H = wq.shape[0]
    Hp = _round_up(H, _LANE)                      # pad each QKV segment to full lanes
    if block_b is None:
        block_b = _pick_block_b(B, T, C, Hp)
    assert B % block_b == 0, "block_b must divide B"

    scale = jnp.float32(C ** (-0.5))

    def seg(w, s=None):                           # [H, C] -> padded [C, Hp]
        w_t = (w if s is None else w * s).T.astype(jnp.float32)
        return jnp.pad(w_t, ((0, 0), (0, Hp - H)))

    # Fused, pre-transposed, lane-padded QKV weight; scale folded into Q columns.
    w_qkv = jnp.concatenate([seg(wq, scale), seg(wk), seg(wv)],
                            axis=1).astype(jnp.bfloat16)              # [C, 3*Hp]

    # Additive key-mask bias, precomputed once: 0 = keep, -1e30 = masked (finite).
    bias = jnp.where(attention_mask.reshape(B, 1, T) == 0,
                     jnp.float32(_MASK_NEG), jnp.float32(0.0))

    x_bf16 = x.astype(jnp.bfloat16)

    # Raise the scoped VMEM limit only if the chosen block actually needs it.
    needed = _vmem_block_bytes(block_b, T, C, Hp)
    vmem_limit = int(needed * 3 // 2) if needed > 12 * 1024 * 1024 else None

    grid_spec = pltpu.PrefetchScalarGridSpec(
        num_scalar_prefetch=0,
        grid=(B // block_b,),
        in_specs=[
            pl.BlockSpec((block_b, T, C), lambda b: (b, 0, 0)),       # x block
            pl.BlockSpec((block_b, 1, T), lambda b: (b, 0, 0)),       # mask-bias block
            # Grid-invariant weight (constant index_map).  pipeline_mode=pl.Buffered(1)
            # would save one VMEM copy at realistic C; negligible here, left default.
            pl.BlockSpec((C, 3 * Hp), lambda b: (0, 0)),
        ],
        out_specs=pl.BlockSpec((block_b, T, Hp), lambda b: (b, 0, 0)),
    )

    out_padded = pl.pallas_call(
        _head_kernel,
        out_shape=jax.ShapeDtypeStruct((B, T, Hp), jnp.float32),
        grid_spec=grid_spec,
        compiler_params=pltpu.CompilerParams(
            dimension_semantics=("parallel",),
            vmem_limit_bytes=vmem_limit),
    )(x_bf16, bias, w_qkv)

    # Drop the zero padding lanes (with multiple fused heads these would be real data).
    return out_padded[..., :H].astype(x.dtype)


def head_reference(x, attention_mask, wq, wk, wv):
    """Pure-JAX f32 reference mirroring the PyTorch forward (eval mode)."""
    C = x.shape[-1]
    q = jnp.einsum("btc,hc->bth", x, wq)
    k = jnp.einsum("btc,hc->bth", x, wk)
    v = jnp.einsum("btc,hc->bth", x, wv)
    wei = jnp.einsum("bth,bsh->bts", q, k) * C ** (-0.5)
    wei = jnp.where(attention_mask[:, None, :] == 0, -jnp.inf, wei)
    wei = jax.nn.softmax(wei, axis=-1)
    return jnp.einsum("bts,bsh->bth", wei, v)


if __name__ == "__main__":
    B, T, C, H = 2, 8, 32, 16  # batch, seq, embed_dim, head_size

    key = jax.random.PRNGKey(0)
    kx, kq, kk, kv, km = jax.random.split(key, 5)

    x = jax.random.normal(kx, (B, T, C), dtype=jnp.float32)
    bound = 1.0 / (C ** 0.5)
    wq = jax.random.uniform(kq, (H, C), minval=-bound, maxval=bound, dtype=jnp.float32)
    wk = jax.random.uniform(kk, (H, C), minval=-bound, maxval=bound, dtype=jnp.float32)
    wv = jax.random.uniform(kv, (H, C), minval=-bound, maxval=bound, dtype=jnp.float32)

    # attention_mask: 1 = keep, 0 = masked; keep at least the first token per row
    attention_mask = (jax.random.uniform(km, (B, T)) > 0.3).astype(jnp.float32)
    attention_mask = attention_mask.at[:, 0].set(1.0)

    out = head_forward(x, attention_mask, wq, wk, wv)
    out = jax.block_until_ready(out)

    ref = head_reference(x, attention_mask, wq, wk, wv)
    assert out.shape == (B, T, H)
    # Tolerance covers the bf16 matmul operands (f32 accumulation / f32 output);
    # the softmax normalization itself is exact.
    assert jnp.allclose(out, ref, atol=2e-2, rtol=2e-2), "mismatch vs reference"

    print("KERNEL_OK")
</pallas_src>

<mosaic_0001>
module attributes {stable_mosaic.version = 11 : i64} {
  func.func @_head_kernel(%arg0: i32, %arg1: memref<2x8x32xbf16, #tpu.memory_space<vmem>>, %arg2: memref<2x1x8xf32, #tpu.memory_space<vmem>>, %arg3: memref<32x384xbf16, #tpu.memory_space<vmem>>, %arg4: memref<2x8x128xf32, #tpu.memory_space<vmem>>) attributes {dimension_semantics = [#tpu.dimension_semantics<parallel>], iteration_bounds = array<i64: 1>, scalar_prefetch = 0 : i64, scratch_operands = 0 : i64, tpu.core_type = #tpu.core_type<tc>, window_params = [{transform_indices = @transform_0, window_bounds = array<i64: 2, 8, 32>}, {transform_indices = @transform_1, window_bounds = array<i64: 2, 1, 8>}, {pipeline_mode = #tpu.pipeline_mode<synchronous>, transform_indices = @transform_2, window_bounds = array<i64: 32, 384>}, {transform_indices = @transform_3, window_bounds = array<i64: 2, 8, 128>}]} {
    %c0 = arith.constant 0 : index
    %c0_0 = arith.constant 0 : index
    %c0_1 = arith.constant 0 : index
    %0 = vector.load %arg1[%c0, %c0_0, %c0_1] : memref<2x8x32xbf16, #tpu.memory_space<vmem>>, vector<2x8x32xbf16>
    %1 = vector.shape_cast %0 : vector<2x8x32xbf16> to vector<16x32xbf16>
    %c0_2 = arith.constant 0 : index
    %c0_3 = arith.constant 0 : index
    %2 = vector.load %arg3[%c0_2, %c0_3] : memref<32x384xbf16, #tpu.memory_space<vmem>>, vector<32x384xbf16>
    %cst = arith.constant dense<0.000000e+00> : vector<16x384xf32>
    %3 = tpu.matmul %1, %2, %cst {dimension_numbers = #tpu.dot_dimension_numbers<[1], [0], [0], [1], [0, 0, 1, 1], [], []>} : vector<16x32xbf16>, vector<32x384xbf16>, vector<16x384xf32> -> vector<16x384xf32>
    %4 = vector.extract_strided_slice %3 {offsets = [0, 0], sizes = [16, 128], strides = [1, 1]} : vector<16x384xf32> to vector<16x128xf32>
    %5 = arith.truncf %4 : vector<16x128xf32> to vector<16x128xbf16>
    %6 = vector.shape_cast %5 : vector<16x128xbf16> to vector<2x8x128xbf16>
    %7 = vector.extract_strided_slice %3 {offsets = [0, 128], sizes = [16, 128], strides = [1, 1]} : vector<16x384xf32> to vector<16x128xf32>
    %8 = arith.truncf %7 : vector<16x128xf32> to vector<16x128xbf16>
    %9 = vector.shape_cast %8 : vector<16x128xbf16> to vector<2x8x128xbf16>
    %10 = vector.extract_strided_slice %3 {offsets = [0, 256], sizes = [16, 128], strides = [1, 1]} : vector<16x384xf32> to vector<16x128xf32>
    %11 = arith.truncf %10 : vector<16x128xf32> to vector<16x128xbf16>
    %12 = vector.shape_cast %11 : vector<16x128xbf16> to vector<2x8x128xbf16>
    %cst_4 = arith.constant dense<0.000000e+00> : vector<2x8x8xf32>
    %13 = tpu.matmul %6, %9, %cst_4 {dimension_numbers = #tpu.dot_dimension_numbers<[2], [2], [1], [1], [0, 0, 0, 1, 1, 1], [0], [0]>} : vector<2x8x128xbf16>, vector<2x8x128xbf16>, vector<2x8x8xf32> -> vector<2x8x8xf32>
    %c0_5 = arith.constant 0 : index
    %c0_6 = arith.constant 0 : index
    %c0_7 = arith.constant 0 : index
    %14 = vector.load %arg2[%c0_5, %c0_6, %c0_7] : memref<2x1x8xf32, #tpu.memory_space<vmem>>, vector<2x1x8xf32>
    %15 = vector.broadcast %14 : vector<2x1x8xf32> to vector<2x8x8xf32>
    %16 = arith.addf %13, %15 : vector<2x8x8xf32>
    %cst_8 = arith.constant dense<0xFF800000> : vector<2x8xf32>
    %17 = vector.multi_reduction <maximumf>, %16, %cst_8 [2] : vector<2x8x8xf32> to vector<2x8xf32>
    %18 = vector.shape_cast %17 : vector<2x8xf32> to vector<2x8x1xf32>
    %19 = vector.broadcast %18 : vector<2x8x1xf32> to vector<2x8x8xf32>
    %20 = arith.subf %16, %19 : vector<2x8x8xf32>
    %21 = math.exp %20 : vector<2x8x8xf32>
    %cst_9 = arith.constant dense<0.000000e+00> : vector<2x8xf32>
    %22 = vector.multi_reduction <add>, %21, %cst_9 [2] : vector<2x8x8xf32> to vector<2x8xf32>
    %23 = vector.shape_cast %22 : vector<2x8xf32> to vector<2x8x1xf32>
    %24 = vector.broadcast %23 : vector<2x8x1xf32> to vector<2x8x8xf32>
    %25 = arith.divf %21, %24 : vector<2x8x8xf32>
    %26 = arith.truncf %25 : vector<2x8x8xf32> to vector<2x8x8xbf16>
    %cst_10 = arith.constant dense<0.000000e+00> : vector<2x8x128xf32>
    %27 = tpu.matmul %26, %12, %cst_10 {dimension_numbers = #tpu.dot_dimension_numbers<[2], [1], [1], [2], [0, 0, 0, 1, 1, 2], [0], [0]>} : vector<2x8x8xbf16>, vector<2x8x128xbf16>, vector<2x8x128xf32> -> vector<2x8x128xf32>
    %c0_11 = arith.constant 0 : index
    %c0_12 = arith.constant 0 : index
    %c0_13 = arith.constant 0 : index
    %28 = vector.load %arg4[%c0_11, %c0_12, %c0_13] : memref<2x8x128xf32, #tpu.memory_space<vmem>>, vector<2x8x128xf32>
    tpu.vector_store %arg4[%c0_11, %c0_12, %c0_13], %27 {strides = array<i32>} : memref<2x8x128xf32, #tpu.memory_space<vmem>>, vector<2x8x128xf32>,
    return
  }
  func.func @transform_0(%arg0: i32) -> (i32, i32, i32) {
    %c0_i32 = arith.constant 0 : i32
    %c0_i32_0 = arith.constant 0 : i32
    %c0_i32_1 = arith.constant 0 : i32
    return %arg0, %c0_i32, %c0_i32_0 : i32, i32, i32
  }
  func.func @transform_1(%arg0: i32) -> (i32, i32, i32) {
    %c0_i32 = arith.constant 0 : i32
    %c0_i32_0 = arith.constant 0 : i32
    %c0_i32_1 = arith.constant 0 : i32
    return %arg0, %c0_i32, %c0_i32_0 : i32, i32, i32
  }
  func.func @transform_2(%arg0: i32) -> (i32, i32) {
    %c0_i32 = arith.constant 0 : i32
    %c0_i32_0 = arith.constant 0 : i32
    %c0_i32_1 = arith.constant 0 : i32
    return %c0_i32, %c0_i32_0 : i32, i32
  }
  func.func @transform_3(%arg0: i32) -> (i32, i32, i32) {
    %c0_i32 = arith.constant 0 : i32
    %c0_i32_0 = arith.constant 0 : i32
    %c0_i32_1 = arith.constant 0 : i32
    return %arg0, %c0_i32, %c0_i32_0 : i32, i32, i32
  }
}

</mosaic_0001>

<llo_original>
// kernel: tpu_custom_call.1
$region0: #{tpu_custom_call.1}
  #allocation0 [shape = 'u32[]', space=smem, size = 0x4, offset = 0x4, fixed_abs, tag = 'smem constant byte address 0x4 - core index']
  #allocation1 [shape = 'u32[144,128]{1,0:T(1,128)}', space=vmem, size = 0x12000, scoped, tag = 'internal scratch']
  %s0 = inlined_call_operand.hbm [shape: bf16[2,8,32], index: 0, kind: input, shape index: {}]
  %s1 = inlined_call_operand.vmem [shape: f32[2,1,8], index: 1, kind: input, shape index: {}]
  %s2 = inlined_call_operand.hbm [shape: bf16[32,384], index: 2, kind: input, shape index: {}]
  %s3 = inlined_call_operand.hbm [shape: f32[2,8,128], index: 3, kind: output, shape index: {}]
  %s4 = sld [smem:[#allocation0]]
  $region30: #{tpu_custom_call.1} parent=0
    _
  %s6 = ssub.s32 1, %s4
  %s7 = scalar_select 0, %s6, %s4
  $region1: #{tpu_custom_call.1} parent=0
    #allocation2 [shape = 'u8[4096]{0}', space=vmem, size = 0x1000, scoped, tag = 'input window, operand 0, single buffered']
    #allocation3 [shape = 's32[1]{0}', space=sflag, size = 0x4, scoped, tag = 'scoped memory for tpu_custom_call.1']
    #allocation4 [shape = 's32[1]{0}', space=sflag, size = 0x4, scoped, tag = 'scoped memory for tpu_custom_call.1']
    #allocation5 [shape = 'u8[24576]{0}', space=vmem, size = 0x6000, scoped, tag = 'input window, operand 2, single buffered']
    #allocation6 [shape = 's32[1]{0}', space=sflag, size = 0x4, scoped, tag = 'scoped memory for tpu_custom_call.1']
    #allocation7 [shape = 'u8[8192]{0}', space=vmem, size = 0x2000, scoped, tag = 'output window, operand 0, single buffered']
    %8 = vsyncpa [#allocation3], 0
    %9 = vsyncpa [#allocation6], 0
    %10 = vsyncpa [#allocation4], 0
    // Predicated region
    $region2: #{tpu_custom_call.1} parent=1 // pred_check
      _
    $region3: #{tpu_custom_call.1} parent=1 // pred_check_branch
      %12 = sbr.rel (0) target = $region5
    $region4: #{tpu_custom_call.1} parent=1 // pred_region
      %s14 = ssub.s32 128, 128
      %15 = vsyncadd [#allocation3], %s14
      %s16 = sshll.u32 [#allocation2], 4
      %s17 = int_to_ptr.vmem [resolvable:$true] %s16
      %22 = dma.hbm_to_vmem [thread:$0]  %s0, 128, %s17, [#allocation3], 64, 64, 4
    $region5: #{tpu_custom_call.1} parent=1 // pred_fallthru
      _
    // Predicated region
    $region6: #{tpu_custom_call.1} parent=1 // pred_check
      _
    $region7: #{tpu_custom_call.1} parent=1 // pred_check_branch
      %24 = sbr.rel (0) target = $region9
    $region8: #{tpu_custom_call.1} parent=1 // pred_region
      _
    $region9: #{tpu_custom_call.1} parent=1 // pred_fallthru
      _
    // Predicated region
    $region10: #{tpu_custom_call.1} parent=1 // pred_check
      _
    $region11: #{tpu_custom_call.1} parent=1 // pred_check_branch
      %26 = sbr.rel (0) target = $region13
    $region12: #{tpu_custom_call.1} parent=1 // pred_region
      %s28 = ssub.s32 768, 768
      %29 = vsyncadd [#allocation6], %s28
      %s30 = sshll.u32 [#allocation5], 4
      %s31 = int_to_ptr.vmem [resolvable:$true] %s30
      %36 = dma.hbm_to_vmem [thread:$0]  %s2, 768, %s31, [#allocation6], 192, 192, 12
    $region13: #{tpu_custom_call.1} parent=1 // pred_fallthru
      _
    // Predicated region
    $region14: #{tpu_custom_call.1} parent=1 // pred_check
      _
    $region15: #{tpu_custom_call.1} parent=1 // pred_check_branch
      %38 = sbr.rel (0) target = $region17
    $region16: #{tpu_custom_call.1} parent=1 // pred_region
      %39 = dma.done [#allocation3], 128
    $region17: #{tpu_custom_call.1} parent=1 // pred_fallthru
      _
    // Predicated region
    $region18: #{tpu_custom_call.1} parent=1 // pred_check
      _
    $region19: #{tpu_custom_call.1} parent=1 // pred_check_branch
      %41 = sbr.rel (0) target = $region21
    $region20: #{tpu_custom_call.1} parent=1 // pred_region
      %42 = dma.done [#allocation6], 768
    $region21: #{tpu_custom_call.1} parent=1 // pred_fallthru
      _
    %v44 = vld [vmem:[#allocation2] sm:$0xf]
    %v45 = vld [vmem:[#allocation2 + $0x4] sm:$0xf]
    %v46 = vld [vmem:[#allocation5] sm:$0xff]
    %v47 = vld [vmem:[#allocation5 + $0x8] sm:$0xf]
    %v48 = vld [vmem:[#allocation5 + $0xc] sm:$0xff]
    %v49 = vld [vmem:[#allocation5 + $0x14] sm:$0xf]
    %v50 = vld [vmem:[#allocation5 + $0x18] sm:$0xff]
    %v51 = vld [vmem:[#allocation5 + $0x20] sm:$0xf]
    %v52 = vld [vmem:[#allocation5 + $0x24] sm:$0xff]
    %v53 = vld [vmem:[#allocation5 + $0x2c] sm:$0xf]
    %v56 = vunpack.c.l.b16 %v44
    %v57 = vunpack.c.l.b16 %v45
    %v58 = vpack.c.b16 %v57, %v56
    %v67 = vunpack.c.l.b16 %v46
    %v68 = vunpack.c.h.b16 %v46
    %v69 = vunpack.c.l.b16 %v47
    %v70 = vunpack.c.l.b16 %v48
    %v71 = vunpack.c.h.b16 %v48
    %v72 = vunpack.c.l.b16 %v49
    %v73 = vunpack.c.l.b16 %v50
    %v74 = vunpack.c.h.b16 %v50
    %v75 = vunpack.c.l.b16 %v51
    %v76 = vunpack.c.l.b16 %v52
    %v77 = vunpack.c.h.b16 %v52
    %v78 = vunpack.c.l.b16 %v53
    %v79 = vpack.c.b16 %v70, %v67
    %v80 = vpack.c.b16 %v71, %v68
    %v81 = vpack.c.b16 %v72, %v69
    %v82 = vpack.c.b16 %v76, %v73
    %v83 = vpack.c.b16 %v77, %v74
    %v84 = vpack.c.b16 %v78, %v75
    %vm91 = vcmask 261120
    %v93 = vsel %vm91, %v58, 0
    %95 = vmatprep.subr.bf16.mxu0 %v80
    %96 = vmatpush1.bf16.msra.mxu0 %v79
    %97 = vmatprep.subr.bf16.mxu0 %v83
    %98 = vmatpush1.bf16.msra.mxu0 %v82
    %99 = vmatprep.subr.bf16.mxu0 0
    %100 = vmatpush1.bf16.msra.mxu0 0
    %101 = vmatprep.subr.bf16.mxu0 0
    %102 = vmatpush1.bf16.msra.mxu0 0
    %103 = vmatprep.subr.bf16.mxu0 0
    %104 = vmatpush1.bf16.msra.mxu0 0
    %105 = vmatprep.subr.bf16.mxu0 0
    %106 = vmatpush1.bf16.msra.mxu0 0
    %107 = vmatprep.subr.bf16.mxu0 0
    %108 = vmatpush1.bf16.msra.mxu0 0
    %109 = vmatprep.subr.bf16.mxu0 0
    %110 = vmatpush1.bf16.msra.mxu0 0
    %111 = vmatprep.subr.bf16.mxu0 0
    %112 = vmatpush1.bf16.msra.mxu0 0
    %113 = vmatprep.subr.bf16.mxu0 0
    %114 = vmatpush1.bf16.msra.mxu0 0
    %115 = vmatprep.subr.bf16.mxu0 0
    %116 = vmatpush1.bf16.msra.mxu0 0
    %117 = vmatprep.subr.bf16.mxu0 0
    %118 = vmatpush1.bf16.msra.mxu0 0
    %119 = vmatprep.subr.bf16.mxu0 0
    %120 = vmatpush1.bf16.msra.mxu0 0
    %121 = vmatprep.subr.bf16.mxu0 0
    %122 = vmatpush1.bf16.msra.mxu0 0
    %123 = vmatprep.subr.bf16.mxu0 0
    %124 = vmatpush1.bf16.msra.mxu0 0
    %125 = vmatprep.subr.bf16.mxu0 0
    %126 = vmatpush1.bf16.msra.mxu0 0
    %127 = vmatprep.mubr.bf16.mxu0 0
    %128 = vmatmul.mubr.bf16.gmra.mrb[0].mxu0 %v93
    %v129 = vpop.f32.mrb[0].mxu0
    %v130 = vadd.f32 0.0, %v129
    %v131 = vpop.f32.mrb[0].mxu0
    %v132 = vadd.f32 0.0, %v131
    %v133 = vpop.f32.mrb[0].mxu0
    %v134 = vadd.f32 0.0, %v133
    %v135 = vpop.f32.mrb[0].mxu0
    %v136 = vadd.f32 0.0, %v135
    %137 = vdwg.mxu0
    %138 = vmatprep.subr.bf16.mxu0 0
    %139 = vmatpush1.bf16.msra.mxu0 %v81
    %140 = vmatprep.subr.bf16.mxu0 0
    %141 = vmatpush1.bf16.msra.mxu0 %v84
    %142 = vmatprep.subr.bf16.mxu0 0
    %143 = vmatpush1.bf16.msra.mxu0 0
    %144 = vmatprep.subr.bf16.mxu0 0
    %145 = vmatpush1.bf16.msra.mxu0 0
    %146 = vmatprep.subr.bf16.mxu0 0
    %147 = vmatpush1.bf16.msra.mxu0 0
    %148 = vmatprep.subr.bf16.mxu0 0
    %149 = vmatpush1.bf16.msra.mxu0 0
    %150 = vmatprep.subr.bf16.mxu0 0
    %151 = vmatpush1.bf16.msra.mxu0 0
    %152 = vmatprep.subr.bf16.mxu0 0
    %153 = vmatpush1.bf16.msra.mxu0 0
    %154 = vmatprep.subr.bf16.mxu0 0
    %155 = vmatpush1.bf16.msra.mxu0 0
    %156 = vmatprep.subr.bf16.mxu0 0
    %157 = vmatpush1.bf16.msra.mxu0 0
    %158 = vmatprep.subr.bf16.mxu0 0
    %159 = vmatpush1.bf16.msra.mxu0 0
    %160 = vmatprep.subr.bf16.mxu0 0
    %161 = vmatpush1.bf16.msra.mxu0 0
    %162 = vmatprep.subr.bf16.mxu0 0
    %163 = vmatpush1.bf16.msra.mxu0 0
    %164 = vmatprep.subr.bf16.mxu0 0
    %165 = vmatpush1.bf16.msra.mxu0 0
    %166 = vmatprep.subr.bf16.mxu0 0
    %167 = vmatpush1.bf16.msra.mxu0 0
    %168 = vmatprep.subr.bf16.mxu0 0
    %169 = vmatpush1.bf16.msra.mxu0 0
    %170 = vmatprep.mubr.bf16.mxu0 0
    %171 = vmatmul.mubr.bf16.gmra.mrb[0].mxu0 %v93
    %v172 = vpop.f32.mrb[0].mxu0
    %v173 = vadd.f32 0.0, %v172
    %v174 = vpop.f32.mrb[0].mxu0
    %v175 = vpop.f32.mrb[0].mxu0
    %v176 = vadd.f32 0.0, %v175
    %v177 = vpop.f32.mrb[0].mxu0
    %178 = vdwg.mxu0
    %v179 = vpack.c.bf16 %v134, %v130
    %v181 = vunpack.c.l.b16 %v179
    %v182 = vunpack.c.h.b16 %v179
    %v183 = vpack.c.b16 %v181, %v181
    %v184 = vpack.c.b16 %v182, %v182
    %v187 = vpack.c.bf16 %v136, %v132
    %v189 = vunpack.c.l.b16 %v187
    %v190 = vunpack.c.h.b16 %v187
    %v191 = vpack.c.b16 %v189, %v189
    %v192 = vpack.c.b16 %v190, %v190
    %v195 = vpack.c.bf16 %v176, %v173
    %v197 = vunpack.c.l.b16 %v195
    %v198 = vunpack.c.h.b16 %v195
    %v199 = vpack.c.b16 %v197, %v197
    %v200 = vpack.c.b16 %v198, %v198
    %v201 = vld [vmem:[%s1] sm:$0x1]
    %v202 = vld [vmem:[%s1 + $0x1] sm:$0x1]
    %v205 = vlaneseq
    %v206 = vshrl.u32 %v205, 7
    %v207 = vsub.s32 0, %v206
    %v208 = vrot.slane %v201, %v207
    %v209 = vlaneseq
    %v210 = vshrl.u32 %v209, 7
    %v211 = vsub.s32 0, %v210
    %v212 = vrot.slane %v202, %v211
    %215 = vmatprep.subr.bf16.mxu0 0
    %216 = vmatpush1.bf16.xpose.msra.mxu0 %v191
    %217 = vmatprep.subr.bf16.mxu0 0
    %218 = vmatpush1.bf16.xpose.msra.mxu0 0
    %219 = vmatprep.subr.bf16.mxu0 0
    %220 = vmatpush1.bf16.xpose.msra.mxu0 0
    %221 = vmatprep.subr.bf16.mxu0 0
    %222 = vmatpush1.bf16.xpose.msra.mxu0 0
    %223 = vmatprep.subr.bf16.mxu0 0
    %224 = vmatpush1.bf16.xpose.msra.mxu0 0
    %225 = vmatprep.subr.bf16.mxu0 0
    %226 = vmatpush1.bf16.xpose.msra.mxu0 0
    %227 = vmatprep.subr.bf16.mxu0 0
    %228 = vmatpush1.bf16.xpose.msra.mxu0 0
    %229 = vmatprep.subr.bf16.mxu0 0
    %230 = vmatpush1.bf16.xpose.msra.mxu0 0
    %231 = vmatprep.subr.bf16.mxu0 0
    %232 = vmatpush1.bf16.xpose.msra.mxu0 0
    %233 = vmatprep.subr.bf16.mxu0 0
    %234 = vmatpush1.bf16.xpose.msra.mxu0 0
    %235 = vmatprep.subr.bf16.mxu0 0
    %236 = vmatpush1.bf16.xpose.msra.mxu0 0
    %237 = vmatprep.subr.bf16.mxu0 0
    %238 = vmatpush1.bf16.xpose.msra.mxu0 0
    %239 = vmatprep.subr.bf16.mxu0 0
    %240 = vmatpush1.bf16.xpose.msra.mxu0 0
    %241 = vmatprep.subr.bf16.mxu0 0
    %242 = vmatpush1.bf16.xpose.msra.mxu0 0
    %243 = vmatprep.subr.bf16.mxu0 0
    %244 = vmatpush1.bf16.xpose.msra.mxu0 0
    %245 = vmatprep.subr.bf16.mxu0 0
    %246 = vmatpush1.bf16.xpose.msra.mxu0 0
    %247 = vmatprep.mubr.bf16.mxu0 0
    %248 = vmatmul.mubr.bf16.gmra.mrb[0].mxu0 %v183
    %v249 = vpop.f32.mrb[0].mxu0
    %v250 = vadd.f32 %v208, %v249
    %v251 = vpop.f32.mrb[0].mxu0
    %v252 = vpop.f32.mrb[0].mxu0
    %v253 = vpop.f32.mrb[0].mxu0
    %254 = vdwg.mxu0
    %255 = vmatprep.subr.bf16.mxu0 0
    %256 = vmatpush1.bf16.xpose.msra.mxu0 %v192
    %257 = vmatprep.subr.bf16.mxu0 0
    %258 = vmatpush1.bf16.xpose.msra.mxu0 0
    %259 = vmatprep.subr.bf16.mxu0 0
    %260 = vmatpush1.bf16.xpose.msra.mxu0 0
    %261 = vmatprep.subr.bf16.mxu0 0
    %262 = vmatpush1.bf16.xpose.msra.mxu0 0
    %263 = vmatprep.subr.bf16.mxu0 0
    %264 = vmatpush1.bf16.xpose.msra.mxu0 0
    %265 = vmatprep.subr.bf16.mxu0 0
    %266 = vmatpush1.bf16.xpose.msra.mxu0 0
    %267 = vmatprep.subr.bf16.mxu0 0
    %268 = vmatpush1.bf16.xpose.msra.mxu0 0
    %269 = vmatprep.subr.bf16.mxu0 0
    %270 = vmatpush1.bf16.xpose.msra.mxu0 0
    %271 = vmatprep.subr.bf16.mxu0 0
    %272 = vmatpush1.bf16.xpose.msra.mxu0 0
    %273 = vmatprep.subr.bf16.mxu0 0
    %274 = vmatpush1.bf16.xpose.msra.mxu0 0
    %275 = vmatprep.subr.bf16.mxu0 0
    %276 = vmatpush1.bf16.xpose.msra.mxu0 0
    %277 = vmatprep.subr.bf16.mxu0 0
    %278 = vmatpush1.bf16.xpose.msra.mxu0 0
    %279 = vmatprep.subr.bf16.mxu0 0
    %280 = vmatpush1.bf16.xpose.msra.mxu0 0
    %281 = vmatprep.subr.bf16.mxu0 0
    %282 = vmatpush1.bf16.xpose.msra.mxu0 0
    %283 = vmatprep.subr.bf16.mxu0 0
    %284 = vmatpush1.bf16.xpose.msra.mxu0 0
    %285 = vmatprep.subr.bf16.mxu0 0
    %286 = vmatpush1.bf16.xpose.msra.mxu0 0
    %287 = vmatprep.mubr.bf16.mxu0 0
    %288 = vmatmul.mubr.bf16.gmra.mrb[0].mxu0 %v184
    %v289 = vpop.f32.mrb[0].mxu0
    %v290 = vadd.f32 %v212, %v289
    %v291 = vpop.f32.mrb[0].mxu0
    %v292 = vpop.f32.mrb[0].mxu0
    %v293 = vpop.f32.mrb[0].mxu0
    %294 = vdwg.mxu0
    %vm295 = vcmask 64512
    %v296 = vsel %vm295, %v250, -inf
    %297 = vmax.xlane.f32.xlu0 %v296
    %v298 = vpop.xlane.xlu0 %297
    %v299 = vsel %vm295, %v290, -inf
    %300 = vmax.xlane.f32.xlu0 %v299
    %v301 = vpop.xlane.xlu0 %300
    %v302 = vsub.f32 %v250, %v298
    %v303 = vsub.f32 %v290, %v301
    %v304 = vmul.f32 %v302, 1.442695
    %v305 = vpow.pop %v304
    %v306 = vmul.f32 %v303, 1.442695
    %v307 = vpow.pop %v306
    %v308 = vsel %vm295, %v305, 0.0
    %309 = vadd.xlane.f32.xlu0 %v308
    %v310 = vpop.xlane.xlu0 %309
    %v311 = vsel %vm295, %v307, 0.0
    %312 = vadd.xlane.f32.xlu0 %v311
    %v313 = vpop.xlane.xlu0 %312
    %v314 = vrcp.pop %v310
    %v315 = vmul.f32 %v305, %v314
    %v316 = vrcp.pop %v313
    %v317 = vmul.f32 %v307, %v316
    %v318 = vpack.c.bf16 %v315, %v315
    %v319 = vpack.c.bf16 %v317, %v317
    %v321 = vsel %vm295, %v318, 0
    %vm323 = vcmask 1043456
    %v325 = vsel %vm323, %v199, 0
    %327 = vmatprep.subr.bf16.mxu0 0
    %328 = vmatpush1.bf16.msra.mxu0 %v325
    %329 = vmatprep.subr.bf16.mxu0 0
    %330 = vmatpush1.bf16.msra.mxu0 0
    %331 = vmatprep.subr.bf16.mxu0 0
    %332 = vmatpush1.bf16.msra.mxu0 0
    %333 = vmatprep.subr.bf16.mxu0 0
    %334 = vmatpush1.bf16.msra.mxu0 0
    %335 = vmatprep.subr.bf16.mxu0 0
    %336 = vmatpush1.bf16.msra.mxu0 0
    %337 = vmatprep.subr.bf16.mxu0 0
    %338 = vmatpush1.bf16.msra.mxu0 0
    %339 = vmatprep.subr.bf16.mxu0 0
    %340 = vmatpush1.bf16.msra.mxu0 0
    %341 = vmatprep.subr.bf16.mxu0 0
    %342 = vmatpush1.bf16.msra.mxu0 0
    %343 = vmatprep.subr.bf16.mxu0 0
    %344 = vmatpush1.bf16.msra.mxu0 0
    %345 = vmatprep.subr.bf16.mxu0 0
    %346 = vmatpush1.bf16.msra.mxu0 0
    %347 = vmatprep.subr.bf16.mxu0 0
    %348 = vmatpush1.bf16.msra.mxu0 0
    %349 = vmatprep.subr.bf16.mxu0 0
    %350 = vmatpush1.bf16.msra.mxu0 0
    %351 = vmatprep.subr.bf16.mxu0 0
    %352 = vmatpush1.bf16.msra.mxu0 0
    %353 = vmatprep.subr.bf16.mxu0 0
    %354 = vmatpush1.bf16.msra.mxu0 0
    %355 = vmatprep.subr.bf16.mxu0 0
    %356 = vmatpush1.bf16.msra.mxu0 0
    %357 = vmatprep.subr.bf16.mxu0 0
    %358 = vmatpush1.bf16.msra.mxu0 0
    %359 = vmatprep.mubr.bf16.mxu0 0
    %360 = vmatmul.mubr.bf16.gmra.mrb[0].mxu0 %v321
    %v361 = vpop.f32.mrb[0].mxu0
    %v362 = vadd.f32 0.0, %v361
    %v363 = vpop.f32.mrb[0].mxu0
    %v364 = vpop.f32.mrb[0].mxu0
    %v365 = vpop.f32.mrb[0].mxu0
    %366 = vdwg.mxu0
    %v368 = vsel %vm295, %v319, 0
    %v371 = vsel %vm323, %v200, 0
    %373 = vmatprep.subr.bf16.mxu0 0
    %374 = vmatpush1.bf16.msra.mxu0 %v371
    %375 = vmatprep.subr.bf16.mxu0 0
    %376 = vmatpush1.bf16.msra.mxu0 0
    %377 = vmatprep.subr.bf16.mxu0 0
    %378 = vmatpush1.bf16.msra.mxu0 0
    %379 = vmatprep.subr.bf16.mxu0 0
    %380 = vmatpush1.bf16.msra.mxu0 0
    %381 = vmatprep.subr.bf16.mxu0 0
    %382 = vmatpush1.bf16.msra.mxu0 0
    %383 = vmatprep.subr.bf16.mxu0 0
    %384 = vmatpush1.bf16.msra.mxu0 0
    %385 = vmatprep.subr.bf16.mxu0 0
    %386 = vmatpush1.bf16.msra.mxu0 0
    %387 = vmatprep.subr.bf16.mxu0 0
    %388 = vmatpush1.bf16.msra.mxu0 0
    %389 = vmatprep.subr.bf16.mxu0 0
    %390 = vmatpush1.bf16.msra.mxu0 0
    %391 = vmatprep.subr.bf16.mxu0 0
    %392 = vmatpush1.bf16.msra.mxu0 0
    %393 = vmatprep.subr.bf16.mxu0 0
    %394 = vmatpush1.bf16.msra.mxu0 0
    %395 = vmatprep.subr.bf16.mxu0 0
    %396 = vmatpush1.bf16.msra.mxu0 0
    %397 = vmatprep.subr.bf16.mxu0 0
    %398 = vmatpush1.bf16.msra.mxu0 0
    %399 = vmatprep.subr.bf16.mxu0 0
    %400 = vmatpush1.bf16.msra.mxu0 0
    %401 = vmatprep.subr.bf16.mxu0 0
    %402 = vmatpush1.bf16.msra.mxu0 0
    %403 = vmatprep.subr.bf16.mxu0 0
    %404 = vmatpush1.bf16.msra.mxu0 0
    %405 = vmatprep.mubr.bf16.mxu0 0
    %406 = vmatmul.mubr.bf16.gmra.mrb[0].mxu0 %v368
    %v407 = vpop.f32.mrb[0].mxu0
    %v408 = vadd.f32 0.0, %v407
    %v409 = vpop.f32.mrb[0].mxu0
    %v410 = vpop.f32.mrb[0].mxu0
    %v411 = vpop.f32.mrb[0].mxu0
    %412 = vdwg.mxu0
    %413 = vst [vmem:[#allocation7] sm:$0xff] %v362
    %414 = vst [vmem:[#allocation7 + $0x8] sm:$0xff] %v408
    // Predicated region
    $region22: #{tpu_custom_call.1} parent=1 // pred_check
      _
    $region23: #{tpu_custom_call.1} parent=1 // pred_check_branch
      %416 = sbr.rel (0) target = $region25
    $region24: #{tpu_custom_call.1} parent=1 // pred_region
      %s418 = ssub.s32 256, 256
      %419 = vsyncadd [#allocation4], %s418
      %s420 = sshll.u32 [#allocation7], 4
      %s421 = int_to_ptr.vmem [resolvable:$true] %s420
      %426 = dma.vmem_to_hbm [thread:$0]  %s421, 256, %s3, [#allocation4], 128, 128, 8
    $region25: #{tpu_custom_call.1} parent=1 // pred_fallthru
      _
    // Predicated region
    $region26: #{tpu_custom_call.1} parent=1 // pred_check
      _
    $region27: #{tpu_custom_call.1} parent=1 // pred_check_branch
      %428 = sbr.rel (0) target = $region29
    $region28: #{tpu_custom_call.1} parent=1 // pred_region
      %429 = dma.done [#allocation4], 256
    $region29: #{tpu_custom_call.1} parent=1 // pred_fallthru
      _
    %430 = vsyncpa [#allocation3], 1
    %431 = vsyncpa [#allocation6], 1
    %432 = vsyncpa [#allocation4], 1

</llo_original>
